<compile_context>
chip_gen: v7x
topology: tpu7x:2x2x1
jax: 0.10.0
libtpu: 0.0.40
codegen_flags: <defaults>
</compile_context>

<pallas_src>
import functools

import jax
import jax.numpy as jnp
from jax.experimental import pallas as pl
from jax.experimental.pallas import tpu as pltpu

HIDDEN = 256
OUT_PAD = 128  # lane-dense padded width for the scalar q output


def critic_kernel(x_ref, a_ref,
                  w1x_ref, w1a_ref, b1_ref,
                  w2_ref, b2_ref,
                  w3_ref, b3_ref,
                  w4_ref, b4_ref,
                  o_ref,
                  *, inv_max_action, use_sigmoid):
    bf16 = jnp.bfloat16

    x = x_ref[...].astype(bf16)
    a = (a_ref[...] * inv_max_action).astype(bf16)

    # fc1 (split over [x | actions] rows of W1 -> no in-kernel concat needed)
    h = (jnp.dot(x, w1x_ref[...], preferred_element_type=jnp.float32)
         + jnp.dot(a, w1a_ref[...], preferred_element_type=jnp.float32)
         + b1_ref[...])
    h = jnp.maximum(h, 0.0)

    # fc2
    h = jnp.dot(h.astype(bf16), w2_ref[...],
                preferred_element_type=jnp.float32) + b2_ref[...]
    h = jnp.maximum(h, 0.0)

    # fc3
    h = jnp.dot(h.astype(bf16), w3_ref[...],
                preferred_element_type=jnp.float32) + b3_ref[...]
    h = jnp.maximum(h, 0.0)

    # q_out (padded to 128 lanes; only column 0 is meaningful)
    q = jnp.dot(h.astype(bf16), w4_ref[...],
                preferred_element_type=jnp.float32) + b4_ref[...]
    if use_sigmoid:
        q = jax.nn.sigmoid(q)

    o_ref[...] = q.astype(o_ref.dtype)


def critic_forward(x, actions, params, max_action, activation=None, block_m=128):
    """x: (B, obs+goal) f32, actions: (B, action) f32 -> q: (B, 1) f32."""
    B, xg_dim = x.shape
    a_dim = actions.shape[1]

    # Batch tiling: full batch as one block when small, else 128-row tiles.
    tm = block_m if B >= block_m else B
    Bp = pl.cdiv(B, tm) * tm
    if Bp != B:
        pad = Bp - B
        x = jnp.pad(x, ((0, pad), (0, 0)))
        actions = jnp.pad(actions, ((0, pad), (0, 0)))

    kernel = functools.partial(
        critic_kernel,
        inv_max_action=float(1.0 / max_action),
        use_sigmoid=(activation == 'sigmoid'),
    )

    weight_args = (params["w1x"], params["w1a"], params["b1"],
                   params["w2"], params["b2"],
                   params["w3"], params["b3"],
                   params["w4"], params["b4"])

    def resident_spec(arr):
        nd = arr.ndim
        # Constant index_map: the block is identical for every grid step, so
        # the weights are fetched from HBM once and stay VMEM-resident.
        return pl.BlockSpec(arr.shape, lambda i: (0,) * nd)

    in_specs = ([pl.BlockSpec((tm, xg_dim), lambda i: (i, 0)),
                 pl.BlockSpec((tm, a_dim), lambda i: (i, 0))]
                + [resident_spec(w) for w in weight_args])

    out = pl.pallas_call(
        kernel,
        out_shape=jax.ShapeDtypeStruct((Bp, OUT_PAD), jnp.float32),
        grid=(Bp // tm,),
        in_specs=in_specs,
        out_specs=pl.BlockSpec((tm, OUT_PAD), lambda i: (i, 0)),
        compiler_params=pltpu.CompilerParams(
            dimension_semantics=("parallel",),   # v7x: shard batch over 2 TCs
            vmem_limit_bytes=8 << 20,            # footprint is <1 MiB
        ),
    )(x, actions, *weight_args)

    return out[:B, :1]


# ----------------------------- parameters -----------------------------------

def xavier_uniform(key, fan_in, fan_out, gain=1.0):
    bound = gain * jnp.sqrt(6.0 / (fan_in + fan_out))
    return jax.random.uniform(key, (fan_in, fan_out), jnp.float32,
                              minval=-bound, maxval=bound)


def init_critic_params(key, obs_dim, goal_dim, action_dim, hidden=HIDDEN):
    in_dim = obs_dim + goal_dim + action_dim
    xg_dim = obs_dim + goal_dim
    k1, k2, k3, k4 = jax.random.split(key, 4)

    w1 = xavier_uniform(k1, in_dim, hidden)
    w4 = xavier_uniform(k4, hidden, 1)
    w4_pad = jnp.zeros((hidden, OUT_PAD), jnp.float32).at[:, :1].set(w4)

    params = {
        # weights stored bf16 (halves HBM traffic, 2x MXU rate); biases f32.
        "w1x": w1[:xg_dim, :].astype(jnp.bfloat16),
        "w1a": w1[xg_dim:, :].astype(jnp.bfloat16),
        "b1": jnp.zeros((1, hidden), jnp.float32),
        "w2": xavier_uniform(k2, hidden, hidden).astype(jnp.bfloat16),
        "b2": jnp.zeros((1, hidden), jnp.float32),
        "w3": xavier_uniform(k3, hidden, hidden).astype(jnp.bfloat16),
        "b3": jnp.zeros((1, hidden), jnp.float32),
        "w4": w4_pad.astype(jnp.bfloat16),          # zero-padded to 128 lanes
        "b4": jnp.zeros((1, OUT_PAD), jnp.float32),
    }
    return params


# ----------------------------- reference -------------------------------------

def critic_reference(x, actions, params, max_action, activation=None):
    """Pure-JAX reference mirroring the kernel's bf16-weight / f32-accum math."""
    bf16 = jnp.bfloat16
    xb = x.astype(bf16)
    ab = (actions * (1.0 / max_action)).astype(bf16)

    h = (jnp.dot(xb, params["w1x"], preferred_element_type=jnp.float32)
         + jnp.dot(ab, params["w1a"], preferred_element_type=jnp.float32)
         + params["b1"])
    h = jnp.maximum(h, 0.0)
    h = jnp.dot(h.astype(bf16), params["w2"],
                preferred_element_type=jnp.float32) + params["b2"]
    h = jnp.maximum(h, 0.0)
    h = jnp.dot(h.astype(bf16), params["w3"],
                preferred_element_type=jnp.float32) + params["b3"]
    h = jnp.maximum(h, 0.0)
    q = jnp.dot(h.astype(bf16), params["w4"],
                preferred_element_type=jnp.float32) + params["b4"]
    if activation == 'sigmoid':
        q = jax.nn.sigmoid(q)
    return q[:, :1]


if __name__ == "__main__":
    # Small, deterministic shapes consistent with the module.
    obs_dim, goal_dim, action_dim = 10, 3, 4
    max_action = 2.0
    batch = 8

    key = jax.random.PRNGKey(0)
    kx, ka, kp = jax.random.split(key, 3)
    x = jax.random.normal(kx, (batch, obs_dim + goal_dim), jnp.float32)
    actions = jax.random.uniform(ka, (batch, action_dim), jnp.float32,
                                 minval=-max_action, maxval=max_action)
    params = init_critic_params(kp, obs_dim, goal_dim, action_dim)

    # Default activation (None)
    q = critic_forward(x, actions, params, max_action, activation=None)
    q = jax.block_until_ready(q)
    q_ref = critic_reference(x, actions, params, max_action, activation=None)
    assert q.shape == (batch, 1)
    assert jnp.allclose(q, q_ref, atol=1e-3, rtol=1e-3), "mismatch vs reference"

    # Sigmoid head variant
    qs = critic_forward(x, actions, params, max_action, activation='sigmoid')
    qs = jax.block_until_ready(qs)
    qs_ref = critic_reference(x, actions, params, max_action, activation='sigmoid')
    assert jnp.allclose(qs, qs_ref, atol=1e-3, rtol=1e-3), "mismatch vs sigmoid reference"

    print("KERNEL_OK")
</pallas_src>

<mosaic_0001>
module attributes {stable_mosaic.version = 11 : i64} {
  func.func @critic_kernel(%arg0: i32, %arg1: memref<8x13xf32, #tpu.memory_space<vmem>>, %arg2: memref<8x4xf32, #tpu.memory_space<vmem>>, %arg3: memref<13x256xbf16, #tpu.memory_space<vmem>>, %arg4: memref<4x256xbf16, #tpu.memory_space<vmem>>, %arg5: memref<1x256xf32, #tpu.memory_space<vmem>>, %arg6: memref<256x256xbf16, #tpu.memory_space<vmem>>, %arg7: memref<1x256xf32, #tpu.memory_space<vmem>>, %arg8: memref<256x256xbf16, #tpu.memory_space<vmem>>, %arg9: memref<1x256xf32, #tpu.memory_space<vmem>>, %arg10: memref<256x128xbf16, #tpu.memory_space<vmem>>, %arg11: memref<1x128xf32, #tpu.memory_space<vmem>>, %arg12: memref<8x128xf32, #tpu.memory_space<vmem>>) attributes {dimension_semantics = [#tpu.dimension_semantics<parallel>], iteration_bounds = array<i64: 1>, scalar_prefetch = 0 : i64, scratch_operands = 0 : i64, tpu.core_type = #tpu.core_type<tc>, window_params = [{transform_indices = @transform_0, window_bounds = array<i64: 8, 13>}, {transform_indices = @transform_1, window_bounds = array<i64: 8, 4>}, {pipeline_mode = #tpu.pipeline_mode<synchronous>, transform_indices = @transform_2, window_bounds = array<i64: 13, 256>}, {pipeline_mode = #tpu.pipeline_mode<synchronous>, transform_indices = @transform_3, window_bounds = array<i64: 4, 256>}, {pipeline_mode = #tpu.pipeline_mode<synchronous>, transform_indices = @transform_4, window_bounds = array<i64: 1, 256>}, {pipeline_mode = #tpu.pipeline_mode<synchronous>, transform_indices = @transform_5, window_bounds = array<i64: 256, 256>}, {pipeline_mode = #tpu.pipeline_mode<synchronous>, transform_indices = @transform_6, window_bounds = array<i64: 1, 256>}, {pipeline_mode = #tpu.pipeline_mode<synchronous>, transform_indices = @transform_7, window_bounds = array<i64: 256, 256>}, {pipeline_mode = #tpu.pipeline_mode<synchronous>, transform_indices = @transform_8, window_bounds = array<i64: 1, 256>}, {pipeline_mode = #tpu.pipeline_mode<synchronous>, transform_indices = @transform_9, window_bounds = array<i64: 256, 128>}, {pipeline_mode = #tpu.pipeline_mode<synchronous>, transform_indices = @transform_10, window_bounds = array<i64: 1, 128>}, {transform_indices = @transform_11, window_bounds = array<i64: 8, 128>}]} {
    %c0 = arith.constant 0 : index
    %c0_0 = arith.constant 0 : index
    %0 = vector.load %arg1[%c0, %c0_0] : memref<8x13xf32, #tpu.memory_space<vmem>>, vector<8x13xf32>
    %1 = arith.truncf %0 : vector<8x13xf32> to vector<8x13xbf16>
    %c0_1 = arith.constant 0 : index
    %c0_2 = arith.constant 0 : index
    %2 = vector.load %arg2[%c0_1, %c0_2] : memref<8x4xf32, #tpu.memory_space<vmem>>, vector<8x4xf32>
    %cst = arith.constant 5.000000e-01 : f32
    %3 = vector.broadcast %cst : f32 to vector<8x4xf32>
    %4 = arith.mulf %2, %3 : vector<8x4xf32>
    %5 = arith.truncf %4 : vector<8x4xf32> to vector<8x4xbf16>
    %c0_3 = arith.constant 0 : index
    %c0_4 = arith.constant 0 : index
    %6 = vector.load %arg3[%c0_3, %c0_4] : memref<13x256xbf16, #tpu.memory_space<vmem>>, vector<13x256xbf16>
    %cst_5 = arith.constant dense<0.000000e+00> : vector<8x256xf32>
    %7 = tpu.matmul %1, %6, %cst_5 {dimension_numbers = #tpu.dot_dimension_numbers<[1], [0], [0], [1], [0, 0, 1, 1], [], []>} : vector<8x13xbf16>, vector<13x256xbf16>, vector<8x256xf32> -> vector<8x256xf32>
    %c0_6 = arith.constant 0 : index
    %c0_7 = arith.constant 0 : index
    %8 = vector.load %arg4[%c0_6, %c0_7] : memref<4x256xbf16, #tpu.memory_space<vmem>>, vector<4x256xbf16>
    %cst_8 = arith.constant dense<0.000000e+00> : vector<8x256xf32>
    %9 = tpu.matmul %5, %8, %cst_8 {dimension_numbers = #tpu.dot_dimension_numbers<[1], [0], [0], [1], [0, 0, 1, 1], [], []>} : vector<8x4xbf16>, vector<4x256xbf16>, vector<8x256xf32> -> vector<8x256xf32>
    %10 = arith.addf %7, %9 : vector<8x256xf32>
    %c0_9 = arith.constant 0 : index
    %c0_10 = arith.constant 0 : index
    %11 = vector.load %arg5[%c0_9, %c0_10] : memref<1x256xf32, #tpu.memory_space<vmem>>, vector<1x256xf32>
    %12 = vector.broadcast %11 : vector<1x256xf32> to vector<8x256xf32>
    %13 = arith.addf %10, %12 : vector<8x256xf32>
    %cst_11 = arith.constant 0.000000e+00 : f32
    %14 = vector.broadcast %cst_11 : f32 to vector<8x256xf32>
    %15 = arith.maximumf %13, %14 : vector<8x256xf32>
    %16 = arith.truncf %15 : vector<8x256xf32> to vector<8x256xbf16>
    %c0_12 = arith.constant 0 : index
    %c0_13 = arith.constant 0 : index
    %17 = vector.load %arg6[%c0_12, %c0_13] : memref<256x256xbf16, #tpu.memory_space<vmem>>, vector<256x256xbf16>
    %cst_14 = arith.constant dense<0.000000e+00> : vector<8x256xf32>
    %18 = tpu.matmul %16, %17, %cst_14 {dimension_numbers = #tpu.dot_dimension_numbers<[1], [0], [0], [1], [0, 0, 1, 1], [], []>} : vector<8x256xbf16>, vector<256x256xbf16>, vector<8x256xf32> -> vector<8x256xf32>
    %c0_15 = arith.constant 0 : index
    %c0_16 = arith.constant 0 : index
    %19 = vector.load %arg7[%c0_15, %c0_16] : memref<1x256xf32, #tpu.memory_space<vmem>>, vector<1x256xf32>
    %20 = vector.broadcast %19 : vector<1x256xf32> to vector<8x256xf32>
    %21 = arith.addf %18, %20 : vector<8x256xf32>
    %cst_17 = arith.constant 0.000000e+00 : f32
    %22 = vector.broadcast %cst_17 : f32 to vector<8x256xf32>
    %23 = arith.maximumf %21, %22 : vector<8x256xf32>
    %24 = arith.truncf %23 : vector<8x256xf32> to vector<8x256xbf16>
    %c0_18 = arith.constant 0 : index
    %c0_19 = arith.constant 0 : index
    %25 = vector.load %arg8[%c0_18, %c0_19] : memref<256x256xbf16, #tpu.memory_space<vmem>>, vector<256x256xbf16>
    %cst_20 = arith.constant dense<0.000000e+00> : vector<8x256xf32>
    %26 = tpu.matmul %24, %25, %cst_20 {dimension_numbers = #tpu.dot_dimension_numbers<[1], [0], [0], [1], [0, 0, 1, 1], [], []>} : vector<8x256xbf16>, vector<256x256xbf16>, vector<8x256xf32> -> vector<8x256xf32>
    %c0_21 = arith.constant 0 : index
    %c0_22 = arith.constant 0 : index
    %27 = vector.load %arg9[%c0_21, %c0_22] : memref<1x256xf32, #tpu.memory_space<vmem>>, vector<1x256xf32>
    %28 = vector.broadcast %27 : vector<1x256xf32> to vector<8x256xf32>
    %29 = arith.addf %26, %28 : vector<8x256xf32>
    %cst_23 = arith.constant 0.000000e+00 : f32
    %30 = vector.broadcast %cst_23 : f32 to vector<8x256xf32>
    %31 = arith.maximumf %29, %30 : vector<8x256xf32>
    %32 = arith.truncf %31 : vector<8x256xf32> to vector<8x256xbf16>
    %c0_24 = arith.constant 0 : index
    %c0_25 = arith.constant 0 : index
    %33 = vector.load %arg10[%c0_24, %c0_25] : memref<256x128xbf16, #tpu.memory_space<vmem>>, vector<256x128xbf16>
    %cst_26 = arith.constant dense<0.000000e+00> : vector<8x128xf32>
    %34 = tpu.matmul %32, %33, %cst_26 {dimension_numbers = #tpu.dot_dimension_numbers<[1], [0], [0], [1], [0, 0, 1, 1], [], []>} : vector<8x256xbf16>, vector<256x128xbf16>, vector<8x128xf32> -> vector<8x128xf32>
    %c0_27 = arith.constant 0 : index
    %c0_28 = arith.constant 0 : index
    %35 = vector.load %arg11[%c0_27, %c0_28] : memref<1x128xf32, #tpu.memory_space<vmem>>, vector<1x128xf32>
    %36 = vector.broadcast %35 : vector<1x128xf32> to vector<8x128xf32>
    %37 = arith.addf %34, %36 : vector<8x128xf32>
    %c0_29 = arith.constant 0 : index
    %c0_30 = arith.constant 0 : index
    %38 = vector.load %arg12[%c0_29, %c0_30] : memref<8x128xf32, #tpu.memory_space<vmem>>, vector<8x128xf32>
    tpu.vector_store %arg12[%c0_29, %c0_30], %37 {strides = array<i32>} : memref<8x128xf32, #tpu.memory_space<vmem>>, vector<8x128xf32>,
    return
  }
  func.func @transform_0(%arg0: i32) -> (i32, i32) {
    %c0_i32 = arith.constant 0 : i32
    %c0_i32_0 = arith.constant 0 : i32
    return %arg0, %c0_i32 : i32, i32
  }
  func.func @transform_1(%arg0: i32) -> (i32, i32) {
    %c0_i32 = arith.constant 0 : i32
    %c0_i32_0 = arith.constant 0 : i32
    return %arg0, %c0_i32 : i32, i32
  }
  func.func @transform_2(%arg0: i32) -> (i32, i32) {
    %c0_i32 = arith.constant 0 : i32
    %c0_i32_0 = arith.constant 0 : i32
    %c0_i32_1 = arith.constant 0 : i32
    return %c0_i32, %c0_i32_0 : i32, i32
  }
  func.func @transform_3(%arg0: i32) -> (i32, i32) {
    %c0_i32 = arith.constant 0 : i32
    %c0_i32_0 = arith.constant 0 : i32
    %c0_i32_1 = arith.constant 0 : i32
    return %c0_i32, %c0_i32_0 : i32, i32
  }
  func.func @transform_4(%arg0: i32) -> (i32, i32) {
    %c0_i32 = arith.constant 0 : i32
    %c0_i32_0 = arith.constant 0 : i32
    %c0_i32_1 = arith.constant 0 : i32
    return %c0_i32, %c0_i32_0 : i32, i32
  }
  func.func @transform_5(%arg0: i32) -> (i32, i32) {
    %c0_i32 = arith.constant 0 : i32
    %c0_i32_0 = arith.constant 0 : i32
    %c0_i32_1 = arith.constant 0 : i32
    return %c0_i32, %c0_i32_0 : i32, i32
  }
  func.func @transform_6(%arg0: i32) -> (i32, i32) {
    %c0_i32 = arith.constant 0 : i32
    %c0_i32_0 = arith.constant 0 : i32
    %c0_i32_1 = arith.constant 0 : i32
    return %c0_i32, %c0_i32_0 : i32, i32
  }
  func.func @transform_7(%arg0: i32) -> (i32, i32) {
    %c0_i32 = arith.constant 0 : i32
    %c0_i32_0 = arith.constant 0 : i32
    %c0_i32_1 = arith.constant 0 : i32
    return %c0_i32, %c0_i32_0 : i32, i32
  }
  func.func @transform_8(%arg0: i32) -> (i32, i32) {
    %c0_i32 = arith.constant 0 : i32
    %c0_i32_0 = arith.constant 0 : i32
    %c0_i32_1 = arith.constant 0 : i32
    return %c0_i32, %c0_i32_0 : i32, i32
  }
  func.func @transform_9(%arg0: i32) -> (i32, i32) {
    %c0_i32 = arith.constant 0 : i32
    %c0_i32_0 = arith.constant 0 : i32
    %c0_i32_1 = arith.constant 0 : i32
    return %c0_i32, %c0_i32_0 : i32, i32
  }
  func.func @transform_10(%arg0: i32) -> (i32, i32) {
    %c0_i32 = arith.constant 0 : i32
    %c0_i32_0 = arith.constant 0 : i32
    %c0_i32_1 = arith.constant 0 : i32
    return %c0_i32, %c0_i32_0 : i32, i32
  }
  func.func @transform_11(%arg0: i32) -> (i32, i32) {
    %c0_i32 = arith.constant 0 : i32
    %c0_i32_0 = arith.constant 0 : i32
    return %arg0, %c0_i32 : i32, i32
  }
}

</mosaic_0001>

<llo_original>
// kernel: tpu_custom_call.1
$region0: #{tpu_custom_call.1}
  #allocation0 [shape = 'u32[]', space=smem, size = 0x4, offset = 0x4, fixed_abs, tag = 'smem constant byte address 0x4 - core index']
  #allocation1 [shape = 'u32[144,128]{1,0:T(1,128)}', space=vmem, size = 0x12000, scoped, tag = 'internal scratch']
  %s0 = inlined_call_operand.hbm [shape: f32[8,13], index: 0, kind: input, shape index: {}]
  %s1 = inlined_call_operand.vmem [shape: f32[8,4], index: 1, kind: input, shape index: {}]
  %s2 = inlined_call_operand.vmem [shape: bf16[13,256], index: 2, kind: input, shape index: {}]
  %s3 = inlined_call_operand.vmem [shape: bf16[4,256], index: 3, kind: input, shape index: {}]
  %s4 = inlined_call_operand.vmem [shape: f32[1,256], index: 4, kind: input, shape index: {}]
  %s5 = inlined_call_operand.hbm [shape: bf16[256,256], index: 5, kind: input, shape index: {}]
  %s6 = inlined_call_operand.vmem [shape: f32[1,256], index: 6, kind: input, shape index: {}]
  %s7 = inlined_call_operand.hbm [shape: bf16[256,256], index: 7, kind: input, shape index: {}]
  %s8 = inlined_call_operand.vmem [shape: f32[1,256], index: 8, kind: input, shape index: {}]
  %s9 = inlined_call_operand.hbm [shape: bf16[256,128], index: 9, kind: input, shape index: {}]
  %s10 = inlined_call_operand.vmem [shape: f32[1,128], index: 10, kind: input, shape index: {}]
  %s11 = inlined_call_operand.hbm [shape: f32[8,128], index: 11, kind: output, shape index: {}]
  %s12 = sld [smem:[#allocation0]]
  $region70: #{tpu_custom_call.1} parent=0
    _
  %s14 = ssub.s32 1, %s12
  %s15 = scalar_select 0, %s14, %s12
  $region1: #{tpu_custom_call.1} parent=0
    #allocation2 [shape = 'u8[4096]{0}', space=vmem, size = 0x1000, scoped, tag = 'input window, operand 0, single buffered']
    #allocation3 [shape = 's32[1]{0}', space=sflag, size = 0x4, scoped, tag = 'scoped memory for tpu_custom_call.1']
    #allocation4 [shape = 's32[1]{0}', space=sflag, size = 0x4, scoped, tag = 'scoped memory for tpu_custom_call.1']
    #allocation5 [shape = 'u8[131072]{0}', space=vmem, size = 0x20000, scoped, tag = 'input window, operand 5, single buffered']
    #allocation6 [shape = 's32[1]{0}', space=sflag, size = 0x4, scoped, tag = 'scoped memory for tpu_custom_call.1']
    #allocation7 [shape = 'u8[131072]{0}', space=vmem, size = 0x20000, scoped, tag = 'input window, operand 7, single buffered']
    #allocation8 [shape = 'u8[65536]{0}', space=vmem, size = 0x10000, scoped, tag = 'input window, operand 9, single buffered']
    #allocation9 [shape = 's32[1]{0}', space=sflag, size = 0x4, scoped, tag = 'scoped memory for tpu_custom_call.1']
    #allocation10 [shape = 'u8[4096]{0}', space=vmem, size = 0x1000, scoped, tag = 'output window, operand 0, single buffered']
    %16 = vsyncpa [#allocation3], 0
    %17 = vsyncpa [#allocation6], 0
    %18 = vsyncpa [#allocation9], 0
    %19 = vsyncpa [#allocation4], 0
    // Predicated region
    $region2: #{tpu_custom_call.1} parent=1 // pred_check
      _
    $region3: #{tpu_custom_call.1} parent=1 // pred_check_branch
      %21 = sbr.rel (0) target = $region5
    $region4: #{tpu_custom_call.1} parent=1 // pred_region
      %s23 = ssub.s32 128, 128
      %24 = vsyncadd [#allocation3], %s23
      %s26 = sshll.u32 [#allocation2], 4
      %s27 = int_to_ptr.vmem [resolvable:$true] %s26
      %29 = dma.hbm_to_vmem [thread:$0]  %s0, 128, %s27, [#allocation3]
    $region5: #{tpu_custom_call.1} parent=1 // pred_fallthru
      _
    // Predicated region
    $region6: #{tpu_custom_call.1} parent=1 // pred_check
      _
    $region7: #{tpu_custom_call.1} parent=1 // pred_check_branch
      %31 = sbr.rel (0) target = $region9
    $region8: #{tpu_custom_call.1} parent=1 // pred_region
      _
    $region9: #{tpu_custom_call.1} parent=1 // pred_fallthru
      _
    // Predicated region
    $region10: #{tpu_custom_call.1} parent=1 // pred_check
      _
    $region11: #{tpu_custom_call.1} parent=1 // pred_check_branch
      %33 = sbr.rel (0) target = $region13
    $region12: #{tpu_custom_call.1} parent=1 // pred_region
      _
    $region13: #{tpu_custom_call.1} parent=1 // pred_fallthru
      _
    // Predicated region
    $region14: #{tpu_custom_call.1} parent=1 // pred_check
      _
    $region15: #{tpu_custom_call.1} parent=1 // pred_check_branch
      %35 = sbr.rel (0) target = $region17
    $region16: #{tpu_custom_call.1} parent=1 // pred_region
      _
    $region17: #{tpu_custom_call.1} parent=1 // pred_fallthru
      _
    // Predicated region
    $region18: #{tpu_custom_call.1} parent=1 // pred_check
      _
    $region19: #{tpu_custom_call.1} parent=1 // pred_check_branch
      %37 = sbr.rel (0) target = $region21
    $region20: #{tpu_custom_call.1} parent=1 // pred_region
      _
    $region21: #{tpu_custom_call.1} parent=1 // pred_fallthru
      _
    // Predicated region
    $region22: #{tpu_custom_call.1} parent=1 // pred_check
      _
    $region23: #{tpu_custom_call.1} parent=1 // pred_check_branch
      %39 = sbr.rel (0) target = $region25
    $region24: #{tpu_custom_call.1} parent=1 // pred_region
      %s41 = ssub.s32 4096, 4096
      %42 = vsyncadd [#allocation6], %s41
      %s43 = sshll.u32 [#allocation5], 4
      %s44 = int_to_ptr.vmem [resolvable:$true] %s43
      %49 = dma.hbm_to_vmem [thread:$0]  %s5, 4096, %s44, [#allocation6], 128, 128, 8
    $region25: #{tpu_custom_call.1} parent=1 // pred_fallthru
      _
    // Predicated region
    $region26: #{tpu_custom_call.1} parent=1 // pred_check
      _
    $region27: #{tpu_custom_call.1} parent=1 // pred_check_branch
      %51 = sbr.rel (0) target = $region29
    $region28: #{tpu_custom_call.1} parent=1 // pred_region
      _
    $region29: #{tpu_custom_call.1} parent=1 // pred_fallthru
      _
    // Predicated region
    $region30: #{tpu_custom_call.1} parent=1 // pred_check
      _
    $region31: #{tpu_custom_call.1} parent=1 // pred_check_branch
      %53 = sbr.rel (0) target = $region33
    $region32: #{tpu_custom_call.1} parent=1 // pred_region
      %s55 = ssub.s32 4096, 4096
      %56 = vsyncadd [#allocation6], %s55
      %s57 = sshll.u32 [#allocation7], 4
      %s58 = int_to_ptr.vmem [resolvable:$true] %s57
      %63 = dma.hbm_to_vmem [thread:$0]  %s7, 4096, %s58, [#allocation6], 128, 128, 8
    $region33: #{tpu_custom_call.1} parent=1 // pred_fallthru
      _
    // Predicated region
    $region34: #{tpu_custom_call.1} parent=1 // pred_check
      _
    $region35: #{tpu_custom_call.1} parent=1 // pred_check_branch
      %65 = sbr.rel (0) target = $region37
    $region36: #{tpu_custom_call.1} parent=1 // pred_region
      _
    $region37: #{tpu_custom_call.1} parent=1 // pred_fallthru
      _
    // Predicated region
    $region38: #{tpu_custom_call.1} parent=1 // pred_check
      _
    $region39: #{tpu_custom_call.1} parent=1 // pred_check_branch
      %67 = sbr.rel (0) target = $region41
    $region40: #{tpu_custom_call.1} parent=1 // pred_region
      %s69 = ssub.s32 2048, 2048
      %70 = vsyncadd [#allocation9], %s69
      %s71 = sshll.u32 [#allocation8], 4
      %s72 = int_to_ptr.vmem [resolvable:$true] %s71
      %77 = dma.hbm_to_vmem [thread:$0]  %s9, 2048, %s72, [#allocation9], 64, 64, 4
    $region41: #{tpu_custom_call.1} parent=1 // pred_fallthru
      _
    // Predicated region
    $region42: #{tpu_custom_call.1} parent=1 // pred_check
      _
    $region43: #{tpu_custom_call.1} parent=1 // pred_check_branch
      %79 = sbr.rel (0) target = $region45
    $region44: #{tpu_custom_call.1} parent=1 // pred_region
      _
    $region45: #{tpu_custom_call.1} parent=1 // pred_fallthru
      _
    // Predicated region
    $region46: #{tpu_custom_call.1} parent=1 // pred_check
      _
    $region47: #{tpu_custom_call.1} parent=1 // pred_check_branch
      %81 = sbr.rel (0) target = $region49
    $region48: #{tpu_custom_call.1} parent=1 // pred_region
      %82 = dma.done [#allocation3], 128
    $region49: #{tpu_custom_call.1} parent=1 // pred_fallthru
      _
    // Predicated region
    $region50: #{tpu_custom_call.1} parent=1 // pred_check
      _
    $region51: #{tpu_custom_call.1} parent=1 // pred_check_branch
      %84 = sbr.rel (0) target = $region53
    $region52: #{tpu_custom_call.1} parent=1 // pred_region
      %85 = dma.done [#allocation6], 4096
    $region53: #{tpu_custom_call.1} parent=1 // pred_fallthru
      _
    // Predicated region
    $region54: #{tpu_custom_call.1} parent=1 // pred_check
      _
    $region55: #{tpu_custom_call.1} parent=1 // pred_check_branch
      %87 = sbr.rel (0) target = $region57
    $region56: #{tpu_custom_call.1} parent=1 // pred_region
      %88 = dma.done [#allocation6], 4096
    $region57: #{tpu_custom_call.1} parent=1 // pred_fallthru
      _
    // Predicated region
    $region58: #{tpu_custom_call.1} parent=1 // pred_check
      _
    $region59: #{tpu_custom_call.1} parent=1 // pred_check_branch
      %90 = sbr.rel (0) target = $region61
    $region60: #{tpu_custom_call.1} parent=1 // pred_region
      %91 = dma.done [#allocation9], 2048
    $region61: #{tpu_custom_call.1} parent=1 // pred_fallthru
      _
    %v93 = vld [vmem:[#allocation2] sm:$0xff]
    %v94 = vpack.c.bf16 %v93, %v93
    %v95 = vld [vmem:[%s1] sm:$0xff]
    %v96 = vmul.f32 %v95, 0.5
    %v97 = vpack.c.bf16 %v96, %v96
    %v98 = vld [vmem:[%s2] sm:$0xff]
    %v99 = vld [vmem:[%s2 + $0x8] sm:$0x77]
    %v100 = vld [vmem:[%s3] sm:$0xf]
    %v103 = vunpack.c.l.s4 1983009808
    %v104 = vunpack.c.0.s8 %v103
    %v105 = vlaneseq
    %v106 = vshrl.u32 %v105, 7
    %v107 = vsub.s32 %v104, %v106
    %v108 = vrot.slane %v100, %v107
    %v109 = vcombine.high %v108, %v108
    %vm110 = vcmask 31744
    %v112 = vsel %vm110, %v97, 0
    %vm114 = vcmask 1041408
    %v116 = vsel %vm114, %v108, 0
    %v119 = vsel %vm114, %v109, 0
    %121 = vmatprep.subr.bf16.mxu0 %v119
    %122 = vmatpush1.bf16.msra.mxu0 %v116
    %123 = vmatprep.subr.bf16.mxu0 0
    %124 = vmatpush1.bf16.msra.mxu0 0
    %125 = vmatprep.subr.bf16.mxu0 0
    %126 = vmatpush1.bf16.msra.mxu0 0
    %127 = vmatprep.subr.bf16.mxu0 0
    %128 = vmatpush1.bf16.msra.mxu0 0
    %129 = vmatprep.subr.bf16.mxu0 0
    %130 = vmatpush1.bf16.msra.mxu0 0
    %131 = vmatprep.subr.bf16.mxu0 0
    %132 = vmatpush1.bf16.msra.mxu0 0
    %133 = vmatprep.subr.bf16.mxu0 0
    %134 = vmatpush1.bf16.msra.mxu0 0
    %135 = vmatprep.subr.bf16.mxu0 0
    %136 = vmatpush1.bf16.msra.mxu0 0
    %137 = vmatprep.subr.bf16.mxu0 0
    %138 = vmatpush1.bf16.msra.mxu0 0
    %139 = vmatprep.subr.bf16.mxu0 0
    %140 = vmatpush1.bf16.msra.mxu0 0
    %141 = vmatprep.subr.bf16.mxu0 0
    %142 = vmatpush1.bf16.msra.mxu0 0
    %143 = vmatprep.subr.bf16.mxu0 0
    %144 = vmatpush1.bf16.msra.mxu0 0
    %145 = vmatprep.subr.bf16.mxu0 0
    %146 = vmatpush1.bf16.msra.mxu0 0
    %147 = vmatprep.subr.bf16.mxu0 0
    %148 = vmatpush1.bf16.msra.mxu0 0
    %149 = vmatprep.subr.bf16.mxu0 0
    %150 = vmatpush1.bf16.msra.mxu0 0
    %151 = vmatprep.subr.bf16.mxu0 0
    %152 = vmatpush1.bf16.msra.mxu0 0
    %153 = vmatprep.mubr.bf16.mxu0 0
    %154 = vmatmul.mubr.bf16.gmra.mrb[0].mxu0 %v112
    %v155 = vpop.f32.mrb[0].mxu0
    %v156 = vadd.f32 0.0, %v155
    %v157 = vpop.f32.mrb[0].mxu0
    %v158 = vadd.f32 0.0, %v157
    %v159 = vpop.f32.mrb[0].mxu0
    %v160 = vpop.f32.mrb[0].mxu0
    %161 = vdwg.mxu0
    %v164 = vunpack.c.l.b16 %v98
    %v165 = vunpack.c.h.b16 %v98
    %v166 = vunpack.c.l.b16 %v99
    %v167 = vunpack.c.h.b16 %v99
    %v168 = vpack.c.b16 %v166, %v164
    %v169 = vpack.c.b16 %v167, %v165
    %vm170 = vcmask 105472
    %v172 = vsel %vm170, %v94, 0
    %vm174 = vcmask 1045504
    %vm175 = vcmask 1046528
    %v176 = vsel %vm174, 4294967295, 65535
    %v177 = vsel %vm175, %v176, 0
    %v179 = vand.u32 %v168, %v177
    %v182 = vand.u32 %v169, %v177
    %184 = vmatprep.subr.bf16.mxu0 %v182
    %185 = vmatpush1.bf16.msra.mxu0 %v179
    %186 = vmatprep.subr.bf16.mxu0 0
    %187 = vmatpush1.bf16.msra.mxu0 0
    %188 = vmatprep.subr.bf16.mxu0 0
    %189 = vmatpush1.bf16.msra.mxu0 0
    %190 = vmatprep.subr.bf16.mxu0 0
    %191 = vmatpush1.bf16.msra.mxu0 0
    %192 = vmatprep.subr.bf16.mxu0 0
    %193 = vmatpush1.bf16.msra.mxu0 0
    %194 = vmatprep.subr.bf16.mxu0 0
    %195 = vmatpush1.bf16.msra.mxu0 0
    %196 = vmatprep.subr.bf16.mxu0 0
    %197 = vmatpush1.bf16.msra.mxu0 0
    %198 = vmatprep.subr.bf16.mxu0 0
    %199 = vmatpush1.bf16.msra.mxu0 0
    %200 = vmatprep.subr.bf16.mxu0 0
    %201 = vmatpush1.bf16.msra.mxu0 0
    %202 = vmatprep.subr.bf16.mxu0 0
    %203 = vmatpush1.bf16.msra.mxu0 0
    %204 = vmatprep.subr.bf16.mxu0 0
    %205 = vmatpush1.bf16.msra.mxu0 0
    %206 = vmatprep.subr.bf16.mxu0 0
    %207 = vmatpush1.bf16.msra.mxu0 0
    %208 = vmatprep.subr.bf16.mxu0 0
    %209 = vmatpush1.bf16.msra.mxu0 0
    %210 = vmatprep.subr.bf16.mxu0 0
    %211 = vmatpush1.bf16.msra.mxu0 0
    %212 = vmatprep.subr.bf16.mxu0 0
    %213 = vmatpush1.bf16.msra.mxu0 0
    %214 = vmatprep.subr.bf16.mxu0 0
    %215 = vmatpush1.bf16.msra.mxu0 0
    %216 = vmatprep.mubr.bf16.mxu0 0
    %217 = vmatmul.mubr.bf16.gmra.mrb[0].mxu0 %v172
    %v218 = vpop.f32.mrb[0].mxu0
    %v219 = vadd.f32 %v156, %v218
    %v220 = vpop.f32.mrb[0].mxu0
    %v221 = vadd.f32 %v158, %v220
    %v222 = vpop.f32.mrb[0].mxu0
    %v223 = vpop.f32.mrb[0].mxu0
    %224 = vdwg.mxu0
    %v225 = vld [vmem:[%s4] sm:$0x3]
    %v227 = vlaneseq
    %v228 = vshrl.u32 %v227, 7
    %v229 = vsub.s32 0, %v228
    %v230 = vrot.slane %v225, %v229
    %v231 = vlaneseq
    %v232 = vshrl.u32 %v231, 7
    %v233 = vsub.s32 1, %v232
    %v234 = vrot.slane %v225, %v233
    %v237 = vadd.f32 %v219, %v230
    %v238 = vadd.f32 %v221, %v234
    %v239 = vmax.f32 %v237, 0.0
    %v240 = vmax.f32 %v238, 0.0
    %v241 = vpack.c.bf16 %v239, %v239
    %v242 = vpack.c.bf16 %v240, %v240
    %v243 = vld [vmem:[#allocation5] sm:$0xff]
    %v244 = vld [vmem:[#allocation5 + $0x8] sm:$0xff]
    %v245 = vld [vmem:[#allocation5 + $0x10] sm:$0xff]
    %v246 = vld [vmem:[#allocation5 + $0x18] sm:$0xff]
    %v247 = vld [vmem:[#allocation5 + $0x20] sm:$0xff]
    %v248 = vld [vmem:[#allocation5 + $0x28] sm:$0xff]
    %v249 = vld [vmem:[#allocation5 + $0x30] sm:$0xff]
    %v250 = vld [vmem:[#allocation5 + $0x38] sm:$0xff]
    %v251 = vld [vmem:[#allocation5 + $0x40] sm:$0xff]
    %v252 = vld [vmem:[#allocation5 + $0x48] sm:$0xff]
    %v253 = vld [vmem:[#allocation5 + $0x50] sm:$0xff]
    %v254 = vld [vmem:[#allocation5 + $0x58] sm:$0xff]
    %v255 = vld [vmem:[#allocation5 + $0x60] sm:$0xff]
    %v256 = vld [vmem:[#allocation5 + $0x68] sm:$0xff]
    %v257 = vld [vmem:[#allocation5 + $0x70] sm:$0xff]
    %v258 = vld [vmem:[#allocation5 + $0x78] sm:$0xff]
    %v259 = vld [vmem:[#allocation5 + $0x80] sm:$0xff]
    %v260 = vld [vmem:[#allocation5 + $0x88] sm:$0xff]
    %v261 = vld [vmem:[#allocation5 + $0x90] sm:$0xff]
    %v262 = vld [vmem:[#allocation5 + $0x98] sm:$0xff]
    %v263 = vld [vmem:[#allocation5 + $0xa0] sm:$0xff]
    %v264 = vld [vmem:[#allocation5 + $0xa8] sm:$0xff]
    %v265 = vld [vmem:[#allocation5 + $0xb0] sm:$0xff]
    %v266 = vld [vmem:[#allocation5 + $0xb8] sm:$0xff]
    %v267 = vld [vmem:[#allocation5 + $0xc0] sm:$0xff]
    %v268 = vld [vmem:[#allocation5 + $0xc8] sm:$0xff]
    %v269 = vld [vmem:[#allocation5 + $0xd0] sm:$0xff]
    %v270 = vld [vmem:[#allocation5 + $0xd8] sm:$0xff]
    %v271 = vld [vmem:[#allocation5 + $0xe0] sm:$0xff]
    %v272 = vld [vmem:[#allocation5 + $0xe8] sm:$0xff]
    %v273 = vld [vmem:[#allocation5 + $0xf0] sm:$0xff]
    %v274 = vld [vmem:[#allocation5 + $0xf8] sm:$0xff]
    %v275 = vld [vmem:[%s6] sm:$0x3]
    %v277 = vlaneseq
    %v278 = vshrl.u32 %v277, 7
    %v279 = vsub.s32 0, %v278
    %v280 = vrot.slane %v275, %v279
    %v281 = vlaneseq
    %v282 = vshrl.u32 %v281, 7
    %v283 = vsub.s32 1, %v282
    %v284 = vrot.slane %v275, %v283
    %v319 = vunpack.c.l.b16 %v243
    %v320 = vunpack.c.h.b16 %v243
    %v321 = vunpack.c.l.b16 %v244
    %v322 = vunpack.c.h.b16 %v244
    %v323 = vunpack.c.l.b16 %v245
    %v324 = vunpack.c.h.b16 %v245
    %v325 = vunpack.c.l.b16 %v246
    %v326 = vunpack.c.h.b16 %v246
    %v327 = vunpack.c.l.b16 %v247
    %v328 = vunpack.c.h.b16 %v247
    %v329 = vunpack.c.l.b16 %v248
    %v330 = vunpack.c.h.b16 %v248
    %v331 = vunpack.c.l.b16 %v249
    %v332 = vunpack.c.h.b16 %v249
    %v333 = vunpack.c.l.b16 %v250
    %v334 = vunpack.c.h.b16 %v250
    %v335 = vunpack.c.l.b16 %v251
    %v336 = vunpack.c.h.b16 %v251
    %v337 = vunpack.c.l.b16 %v252
    %v338 = vunpack.c.h.b16 %v252
    %v339 = vunpack.c.l.b16 %v253
    %v340 = vunpack.c.h.b16 %v253
    %v341 = vunpack.c.l.b16 %v254
    %v342 = vunpack.c.h.b16 %v254
    %v343 = vunpack.c.l.b16 %v255
    %v344 = vunpack.c.h.b16 %v255
    %v345 = vunpack.c.l.b16 %v256
    %v346 = vunpack.c.h.b16 %v256
    %v347 = vunpack.c.l.b16 %v257
    %v348 = vunpack.c.h.b16 %v257
    %v349 = vunpack.c.l.b16 %v258
    %v350 = vunpack.c.h.b16 %v258
    %v351 = vunpack.c.l.b16 %v259
    %v352 = vunpack.c.h.b16 %v259
    %v353 = vunpack.c.l.b16 %v260
    %v354 = vunpack.c.h.b16 %v260
    %v355 = vunpack.c.l.b16 %v261
    %v356 = vunpack.c.h.b16 %v261
    %v357 = vunpack.c.l.b16 %v262
    %v358 = vunpack.c.h.b16 %v262
    %v359 = vunpack.c.l.b16 %v263
    %v360 = vunpack.c.h.b16 %v263
    %v361 = vunpack.c.l.b16 %v264
    %v362 = vunpack.c.h.b16 %v264
    %v363 = vunpack.c.l.b16 %v265
    %v364 = vunpack.c.h.b16 %v265
    %v365 = vunpack.c.l.b16 %v266
    %v366 = vunpack.c.h.b16 %v266
    %v367 = vunpack.c.l.b16 %v267
    %v368 = vunpack.c.h.b16 %v267
    %v369 = vunpack.c.l.b16 %v268
    %v370 = vunpack.c.h.b16 %v268
    %v371 = vunpack.c.l.b16 %v269
    %v372 = vunpack.c.h.b16 %v269
    %v373 = vunpack.c.l.b16 %v270
    %v374 = vunpack.c.h.b16 %v270
    %v375 = vunpack.c.l.b16 %v271
    %v376 = vunpack.c.h.b16 %v271
    %v377 = vunpack.c.l.b16 %v272
    %v378 = vunpack.c.h.b16 %v272
    %v379 = vunpack.c.l.b16 %v273
    %v380 = vunpack.c.h.b16 %v273
    %v381 = vunpack.c.l.b16 %v274
    %v382 = vunpack.c.h.b16 %v274
    %v383 = vpack.c.b16 %v321, %v319
    %v384 = vpack.c.b16 %v322, %v320
    %v385 = vpack.c.b16 %v325, %v323
    %v386 = vpack.c.b16 %v326, %v324
    %v387 = vpack.c.b16 %v329, %v327
    %v388 = vpack.c.b16 %v330, %v328
    %v389 = vpack.c.b16 %v333, %v331
    %v390 = vpack.c.b16 %v334, %v332
    %v391 = vpack.c.b16 %v337, %v335
    %v392 = vpack.c.b16 %v338, %v336
    %v393 = vpack.c.b16 %v341, %v339
    %v394 = vpack.c.b16 %v342, %v340
    %v395 = vpack.c.b16 %v345, %v343
    %v396 = vpack.c.b16 %v346, %v344
    %v397 = vpack.c.b16 %v349, %v347
    %v398 = vpack.c.b16 %v350, %v348
    %v399 = vpack.c.b16 %v353, %v351
    %v400 = vpack.c.b16 %v354, %v352
    %v401 = vpack.c.b16 %v357, %v355
    %v402 = vpack.c.b16 %v358, %v356
    %v403 = vpack.c.b16 %v361, %v359
    %v404 = vpack.c.b16 %v362, %v360
    %v405 = vpack.c.b16 %v365, %v363
    %v406 = vpack.c.b16 %v366, %v364
    %v407 = vpack.c.b16 %v369, %v367
    %v408 = vpack.c.b16 %v370, %v368
    %v409 = vpack.c.b16 %v373, %v371
    %v410 = vpack.c.b16 %v374, %v372
    %v411 = vpack.c.b16 %v377, %v375
    %v412 = vpack.c.b16 %v378, %v376
    %v413 = vpack.c.b16 %v381, %v379
    %v414 = vpack.c.b16 %v382, %v380
    %447 = vmatprep.subr.bf16.mxu0 %v384
    %448 = vmatpush1.bf16.msra.mxu0 %v383
    %449 = vmatprep.subr.bf16.mxu0 %v386
    %450 = vmatpush1.bf16.msra.mxu0 %v385
    %451 = vmatprep.subr.bf16.mxu0 %v388
    %452 = vmatpush1.bf16.msra.mxu0 %v387
    %453 = vmatprep.subr.bf16.mxu0 %v390
    %454 = vmatpush1.bf16.msra.mxu0 %v389
    %455 = vmatprep.subr.bf16.mxu0 %v392
    %456 = vmatpush1.bf16.msra.mxu0 %v391
    %457 = vmatprep.subr.bf16.mxu0 %v394
    %458 = vmatpush1.bf16.msra.mxu0 %v393
    %459 = vmatprep.subr.bf16.mxu0 %v396
    %460 = vmatpush1.bf16.msra.mxu0 %v395
    %461 = vmatprep.subr.bf16.mxu0 %v398
    %462 = vmatpush1.bf16.msra.mxu0 %v397
    %463 = vmatprep.subr.bf16.mxu0 %v400
    %464 = vmatpush1.bf16.msra.mxu0 %v399
    %465 = vmatprep.subr.bf16.mxu0 %v402
    %466 = vmatpush1.bf16.msra.mxu0 %v401
    %467 = vmatprep.subr.bf16.mxu0 %v404
    %468 = vmatpush1.bf16.msra.mxu0 %v403
    %469 = vmatprep.subr.bf16.mxu0 %v406
    %470 = vmatpush1.bf16.msra.mxu0 %v405
    %471 = vmatprep.subr.bf16.mxu0 %v408
    %472 = vmatpush1.bf16.msra.mxu0 %v407
    %473 = vmatprep.subr.bf16.mxu0 %v410
    %474 = vmatpush1.bf16.msra.mxu0 %v409
    %475 = vmatprep.subr.bf16.mxu0 %v412
    %476 = vmatpush1.bf16.msra.mxu0 %v411
    %477 = vmatprep.subr.bf16.mxu0 %v414
    %478 = vmatpush1.bf16.msra.mxu0 %v413
    %479 = vmatprep.mubr.bf16.mxu0 %v242
    %480 = vmatmul.mubr.bf16.gmra.mrb[0].mxu0 %v241
    %v481 = vpop.f32.mrb[0].mxu0
    %v482 = vadd.f32 %v280, %v481
    %v483 = vpop.f32.mrb[0].mxu0
    %v484 = vadd.f32 %v284, %v483
    %v485 = vpop.f32.mrb[0].mxu0
    %v486 = vpop.f32.mrb[0].mxu0
    %487 = vdwg.mxu0
    %v488 = vmax.f32 %v482, 0.0
    %v489 = vmax.f32 %v484, 0.0
    %v490 = vpack.c.bf16 %v488, %v488
    %v491 = vpack.c.bf16 %v489, %v489
    %v492 = vld [vmem:[#allocation7] sm:$0xff]
    %v493 = vld [vmem:[#allocation7 + $0x8] sm:$0xff]
    %v494 = vld [vmem:[#allocation7 + $0x10] sm:$0xff]
    %v495 = vld [vmem:[#allocation7 + $0x18] sm:$0xff]
    %v496 = vld [vmem:[#allocation7 + $0x20] sm:$0xff]
    %v497 = vld [vmem:[#allocation7 + $0x28] sm:$0xff]
    %v498 = vld [vmem:[#allocation7 + $0x30] sm:$0xff]
    %v499 = vld [vmem:[#allocation7 + $0x38] sm:$0xff]
    %v500 = vld [vmem:[#allocation7 + $0x40] sm:$0xff]
    %v501 = vld [vmem:[#allocation7 + $0x48] sm:$0xff]
    %v502 = vld [vmem:[#allocation7 + $0x50] sm:$0xff]
    %v503 = vld [vmem:[#allocation7 + $0x58] sm:$0xff]
    %v504 = vld [vmem:[#allocation7 + $0x60] sm:$0xff]
    %v505 = vld [vmem:[#allocation7 + $0x68] sm:$0xff]
    %v506 = vld [vmem:[#allocation7 + $0x70] sm:$0xff]
    %v507 = vld [vmem:[#allocation7 + $0x78] sm:$0xff]
    %v508 = vld [vmem:[#allocation7 + $0x80] sm:$0xff]
    %v509 = vld [vmem:[#allocation7 + $0x88] sm:$0xff]
    %v510 = vld [vmem:[#allocation7 + $0x90] sm:$0xff]
    %v511 = vld [vmem:[#allocation7 + $0x98] sm:$0xff]
    %v512 = vld [vmem:[#allocation7 + $0xa0] sm:$0xff]
    %v513 = vld [vmem:[#allocation7 + $0xa8] sm:$0xff]
    %v514 = vld [vmem:[#allocation7 + $0xb0] sm:$0xff]
    %v515 = vld [vmem:[#allocation7 + $0xb8] sm:$0xff]
    %v516 = vld [vmem:[#allocation7 + $0xc0] sm:$0xff]
    %v517 = vld [vmem:[#allocation7 + $0xc8] sm:$0xff]
    %v518 = vld [vmem:[#allocation7 + $0xd0] sm:$0xff]
    %v519 = vld [vmem:[#allocation7 + $0xd8] sm:$0xff]
    %v520 = vld [vmem:[#allocation7 + $0xe0] sm:$0xff]
    %v521 = vld [vmem:[#allocation7 + $0xe8] sm:$0xff]
    %v522 = vld [vmem:[#allocation7 + $0xf0] sm:$0xff]
    %v523 = vld [vmem:[#allocation7 + $0xf8] sm:$0xff]
    %v524 = vld [vmem:[%s8] sm:$0x3]
    %v526 = vlaneseq
    %v527 = vshrl.u32 %v526, 7
    %v528 = vsub.s32 0, %v527
    %v529 = vrot.slane %v524, %v528
    %v530 = vlaneseq
    %v531 = vshrl.u32 %v530, 7
    %v532 = vsub.s32 1, %v531
    %v533 = vrot.slane %v524, %v532
    %v568 = vunpack.c.l.b16 %v492
    %v569 = vunpack.c.h.b16 %v492
    %v570 = vunpack.c.l.b16 %v493
    %v571 = vunpack.c.h.b16 %v493
    %v572 = vunpack.c.l.b16 %v494
    %v573 = vunpack.c.h.b16 %v494
    %v574 = vunpack.c.l.b16 %v495
    %v575 = vunpack.c.h.b16 %v495
    %v576 = vunpack.c.l.b16 %v496
    %v577 = vunpack.c.h.b16 %v496
    %v578 = vunpack.c.l.b16 %v497
    %v579 = vunpack.c.h.b16 %v497
    %v580 = vunpack.c.l.b16 %v498
    %v581 = vunpack.c.h.b16 %v498
    %v582 = vunpack.c.l.b16 %v499
    %v583 = vunpack.c.h.b16 %v499
    %v584 = vunpack.c.l.b16 %v500
    %v585 = vunpack.c.h.b16 %v500
    %v586 = vunpack.c.l.b16 %v501
    %v587 = vunpack.c.h.b16 %v501
    %v588 = vunpack.c.l.b16 %v502
    %v589 = vunpack.c.h.b16 %v502
    %v590 = vunpack.c.l.b16 %v503
    %v591 = vunpack.c.h.b16 %v503
    %v592 = vunpack.c.l.b16 %v504
    %v593 = vunpack.c.h.b16 %v504
    %v594 = vunpack.c.l.b16 %v505
    %v595 = vunpack.c.h.b16 %v505
    %v596 = vunpack.c.l.b16 %v506
    %v597 = vunpack.c.h.b16 %v506
    %v598 = vunpack.c.l.b16 %v507
    %v599 = vunpack.c.h.b16 %v507
    %v600 = vunpack.c.l.b16 %v508
    %v601 = vunpack.c.h.b16 %v508
    %v602 = vunpack.c.l.b16 %v509
    %v603 = vunpack.c.h.b16 %v509
    %v604 = vunpack.c.l.b16 %v510
    %v605 = vunpack.c.h.b16 %v510
    %v606 = vunpack.c.l.b16 %v511
    %v607 = vunpack.c.h.b16 %v511
    %v608 = vunpack.c.l.b16 %v512
    %v609 = vunpack.c.h.b16 %v512
    %v610 = vunpack.c.l.b16 %v513
    %v611 = vunpack.c.h.b16 %v513
    %v612 = vunpack.c.l.b16 %v514
    %v613 = vunpack.c.h.b16 %v514
    %v614 = vunpack.c.l.b16 %v515
    %v615 = vunpack.c.h.b16 %v515
    %v616 = vunpack.c.l.b16 %v516
    %v617 = vunpack.c.h.b16 %v516
    %v618 = vunpack.c.l.b16 %v517
    %v619 = vunpack.c.h.b16 %v517
    %v620 = vunpack.c.l.b16 %v518
    %v621 = vunpack.c.h.b16 %v518
    %v622 = vunpack.c.l.b16 %v519
    %v623 = vunpack.c.h.b16 %v519
    %v624 = vunpack.c.l.b16 %v520
    %v625 = vunpack.c.h.b16 %v520
    %v626 = vunpack.c.l.b16 %v521
    %v627 = vunpack.c.h.b16 %v521
    %v628 = vunpack.c.l.b16 %v522
    %v629 = vunpack.c.h.b16 %v522
    %v630 = vunpack.c.l.b16 %v523
    %v631 = vunpack.c.h.b16 %v523
    %v632 = vpack.c.b16 %v570, %v568
    %v633 = vpack.c.b16 %v571, %v569
    %v634 = vpack.c.b16 %v574, %v572
    %v635 = vpack.c.b16 %v575, %v573
    %v636 = vpack.c.b16 %v578, %v576
    %v637 = vpack.c.b16 %v579, %v577
    %v638 = vpack.c.b16 %v582, %v580
    %v639 = vpack.c.b16 %v583, %v581
    %v640 = vpack.c.b16 %v586, %v584
    %v641 = vpack.c.b16 %v587, %v585
    %v642 = vpack.c.b16 %v590, %v588
    %v643 = vpack.c.b16 %v591, %v589
    %v644 = vpack.c.b16 %v594, %v592
    %v645 = vpack.c.b16 %v595, %v593
    %v646 = vpack.c.b16 %v598, %v596
    %v647 = vpack.c.b16 %v599, %v597
    %v648 = vpack.c.b16 %v602, %v600
    %v649 = vpack.c.b16 %v603, %v601
    %v650 = vpack.c.b16 %v606, %v604
    %v651 = vpack.c.b16 %v607, %v605
    %v652 = vpack.c.b16 %v610, %v608
    %v653 = vpack.c.b16 %v611, %v609
    %v654 = vpack.c.b16 %v614, %v612
    %v655 = vpack.c.b16 %v615, %v613
    %v656 = vpack.c.b16 %v618, %v616
    %v657 = vpack.c.b16 %v619, %v617
    %v658 = vpack.c.b16 %v622, %v620
    %v659 = vpack.c.b16 %v623, %v621
    %v660 = vpack.c.b16 %v626, %v624
    %v661 = vpack.c.b16 %v627, %v625
    %v662 = vpack.c.b16 %v630, %v628
    %v663 = vpack.c.b16 %v631, %v629
    %696 = vmatprep.subr.bf16.mxu0 %v633
    %697 = vmatpush1.bf16.msra.mxu0 %v632
    %698 = vmatprep.subr.bf16.mxu0 %v635
    %699 = vmatpush1.bf16.msra.mxu0 %v634
    %700 = vmatprep.subr.bf16.mxu0 %v637
    %701 = vmatpush1.bf16.msra.mxu0 %v636
    %702 = vmatprep.subr.bf16.mxu0 %v639
    %703 = vmatpush1.bf16.msra.mxu0 %v638
    %704 = vmatprep.subr.bf16.mxu0 %v641
    %705 = vmatpush1.bf16.msra.mxu0 %v640
    %706 = vmatprep.subr.bf16.mxu0 %v643
    %707 = vmatpush1.bf16.msra.mxu0 %v642
    %708 = vmatprep.subr.bf16.mxu0 %v645
    %709 = vmatpush1.bf16.msra.mxu0 %v644
    %710 = vmatprep.subr.bf16.mxu0 %v647
    %711 = vmatpush1.bf16.msra.mxu0 %v646
    %712 = vmatprep.subr.bf16.mxu0 %v649
    %713 = vmatpush1.bf16.msra.mxu0 %v648
    %714 = vmatprep.subr.bf16.mxu0 %v651
    %715 = vmatpush1.bf16.msra.mxu0 %v650
    %716 = vmatprep.subr.bf16.mxu0 %v653
    %717 = vmatpush1.bf16.msra.mxu0 %v652
    %718 = vmatprep.subr.bf16.mxu0 %v655
    %719 = vmatpush1.bf16.msra.mxu0 %v654
    %720 = vmatprep.subr.bf16.mxu0 %v657
    %721 = vmatpush1.bf16.msra.mxu0 %v656
    %722 = vmatprep.subr.bf16.mxu0 %v659
    %723 = vmatpush1.bf16.msra.mxu0 %v658
    %724 = vmatprep.subr.bf16.mxu0 %v661
    %725 = vmatpush1.bf16.msra.mxu0 %v660
    %726 = vmatprep.subr.bf16.mxu0 %v663
    %727 = vmatpush1.bf16.msra.mxu0 %v662
    %728 = vmatprep.mubr.bf16.mxu0 %v491
    %729 = vmatmul.mubr.bf16.gmra.mrb[0].mxu0 %v490
    %v730 = vpop.f32.mrb[0].mxu0
    %v731 = vadd.f32 %v529, %v730
    %v732 = vpop.f32.mrb[0].mxu0
    %v733 = vadd.f32 %v533, %v732
    %v734 = vpop.f32.mrb[0].mxu0
    %v735 = vpop.f32.mrb[0].mxu0
    %736 = vdwg.mxu0
    %v737 = vmax.f32 %v731, 0.0
    %v738 = vmax.f32 %v733, 0.0
    %v739 = vpack.c.bf16 %v737, %v737
    %v740 = vpack.c.bf16 %v738, %v738
    %v741 = vld [vmem:[#allocation8] sm:$0xf]
    %v742 = vld [vmem:[#allocation8 + $0x4] sm:$0xf]
    %v743 = vld [vmem:[#allocation8 + $0x8] sm:$0xf]
    %v744 = vld [vmem:[#allocation8 + $0xc] sm:$0xf]
    %v745 = vld [vmem:[#allocation8 + $0x10] sm:$0xf]
    %v746 = vld [vmem:[#allocation8 + $0x14] sm:$0xf]
    %v747 = vld [vmem:[#allocation8 + $0x18] sm:$0xf]
    %v748 = vld [vmem:[#allocation8 + $0x1c] sm:$0xf]
    %v749 = vld [vmem:[#allocation8 + $0x20] sm:$0xf]
    %v750 = vld [vmem:[#allocation8 + $0x24] sm:$0xf]
    %v751 = vld [vmem:[#allocation8 + $0x28] sm:$0xf]
    %v752 = vld [vmem:[#allocation8 + $0x2c] sm:$0xf]
    %v753 = vld [vmem:[#allocation8 + $0x30] sm:$0xf]
    %v754 = vld [vmem:[#allocation8 + $0x34] sm:$0xf]
    %v755 = vld [vmem:[#allocation8 + $0x38] sm:$0xf]
    %v756 = vld [vmem:[#allocation8 + $0x3c] sm:$0xf]
    %v757 = vld [vmem:[#allocation8 + $0x40] sm:$0xf]
    %v758 = vld [vmem:[#allocation8 + $0x44] sm:$0xf]
    %v759 = vld [vmem:[#allocation8 + $0x48] sm:$0xf]
    %v760 = vld [vmem:[#allocation8 + $0x4c] sm:$0xf]
    %v761 = vld [vmem:[#allocation8 + $0x50] sm:$0xf]
    %v762 = vld [vmem:[#allocation8 + $0x54] sm:$0xf]
    %v763 = vld [vmem:[#allocation8 + $0x58] sm:$0xf]
    %v764 = vld [vmem:[#allocation8 + $0x5c] sm:$0xf]
    %v765 = vld [vmem:[#allocation8 + $0x60] sm:$0xf]
    %v766 = vld [vmem:[#allocation8 + $0x64] sm:$0xf]
    %v767 = vld [vmem:[#allocation8 + $0x68] sm:$0xf]
    %v768 = vld [vmem:[#allocation8 + $0x6c] sm:$0xf]
    %v769 = vld [vmem:[#allocation8 + $0x70] sm:$0xf]
    %v770 = vld [vmem:[#allocation8 + $0x74] sm:$0xf]
    %v771 = vld [vmem:[#allocation8 + $0x78] sm:$0xf]
    %v772 = vld [vmem:[#allocation8 + $0x7c] sm:$0xf]
    %v773 = vld [vmem:[%s10] sm:$0x1]
    %v775 = vlaneseq
    %v776 = vshrl.u32 %v775, 7
    %v777 = vsub.s32 0, %v776
    %v778 = vrot.slane %v773, %v777
    %v812 = vunpack.c.l.b16 %v741
    %v813 = vunpack.c.l.b16 %v742
    %v814 = vunpack.c.l.b16 %v743
    %v815 = vunpack.c.l.b16 %v744
    %v816 = vunpack.c.l.b16 %v745
    %v817 = vunpack.c.l.b16 %v746
    %v818 = vunpack.c.l.b16 %v747
    %v819 = vunpack.c.l.b16 %v748
    %v820 = vunpack.c.l.b16 %v749
    %v821 = vunpack.c.l.b16 %v750
    %v822 = vunpack.c.l.b16 %v751
    %v823 = vunpack.c.l.b16 %v752
    %v824 = vunpack.c.l.b16 %v753
    %v825 = vunpack.c.l.b16 %v754
    %v826 = vunpack.c.l.b16 %v755
    %v827 = vunpack.c.l.b16 %v756
    %v828 = vunpack.c.l.b16 %v757
    %v829 = vunpack.c.l.b16 %v758
    %v830 = vunpack.c.l.b16 %v759
    %v831 = vunpack.c.l.b16 %v760
    %v832 = vunpack.c.l.b16 %v761
    %v833 = vunpack.c.l.b16 %v762
    %v834 = vunpack.c.l.b16 %v763
    %v835 = vunpack.c.l.b16 %v764
    %v836 = vunpack.c.l.b16 %v765
    %v837 = vunpack.c.l.b16 %v766
    %v838 = vunpack.c.l.b16 %v767
    %v839 = vunpack.c.l.b16 %v768
    %v840 = vunpack.c.l.b16 %v769
    %v841 = vunpack.c.l.b16 %v770
    %v842 = vunpack.c.l.b16 %v771
    %v843 = vunpack.c.l.b16 %v772
    %v844 = vpack.c.b16 %v813, %v812
    %v845 = vpack.c.b16 %v815, %v814
    %v846 = vpack.c.b16 %v817, %v816
    %v847 = vpack.c.b16 %v819, %v818
    %v848 = vpack.c.b16 %v821, %v820
    %v849 = vpack.c.b16 %v823, %v822
    %v850 = vpack.c.b16 %v825, %v824
    %v851 = vpack.c.b16 %v827, %v826
    %v852 = vpack.c.b16 %v829, %v828
    %v853 = vpack.c.b16 %v831, %v830
    %v854 = vpack.c.b16 %v833, %v832
    %v855 = vpack.c.b16 %v835, %v834
    %v856 = vpack.c.b16 %v837, %v836
    %v857 = vpack.c.b16 %v839, %v838
    %v858 = vpack.c.b16 %v841, %v840
    %v859 = vpack.c.b16 %v843, %v842
    %876 = vmatprep.subr.bf16.mxu0 0
    %877 = vmatpush1.bf16.msra.mxu0 %v844
    %878 = vmatprep.subr.bf16.mxu0 0
    %879 = vmatpush1.bf16.msra.mxu0 %v845
    %880 = vmatprep.subr.bf16.mxu0 0
    %881 = vmatpush1.bf16.msra.mxu0 %v846
    %882 = vmatprep.subr.bf16.mxu0 0
    %883 = vmatpush1.bf16.msra.mxu0 %v847
    %884 = vmatprep.subr.bf16.mxu0 0
    %885 = vmatpush1.bf16.msra.mxu0 %v848
    %886 = vmatprep.subr.bf16.mxu0 0
    %887 = vmatpush1.bf16.msra.mxu0 %v849
    %888 = vmatprep.subr.bf16.mxu0 0
    %889 = vmatpush1.bf16.msra.mxu0 %v850
    %890 = vmatprep.subr.bf16.mxu0 0
    %891 = vmatpush1.bf16.msra.mxu0 %v851
    %892 = vmatprep.subr.bf16.mxu0 0
    %893 = vmatpush1.bf16.msra.mxu0 %v852
    %894 = vmatprep.subr.bf16.mxu0 0
    %895 = vmatpush1.bf16.msra.mxu0 %v853
    %896 = vmatprep.subr.bf16.mxu0 0
    %897 = vmatpush1.bf16.msra.mxu0 %v854
    %898 = vmatprep.subr.bf16.mxu0 0
    %899 = vmatpush1.bf16.msra.mxu0 %v855
    %900 = vmatprep.subr.bf16.mxu0 0
    %901 = vmatpush1.bf16.msra.mxu0 %v856
    %902 = vmatprep.subr.bf16.mxu0 0
    %903 = vmatpush1.bf16.msra.mxu0 %v857
    %904 = vmatprep.subr.bf16.mxu0 0
    %905 = vmatpush1.bf16.msra.mxu0 %v858
    %906 = vmatprep.subr.bf16.mxu0 0
    %907 = vmatpush1.bf16.msra.mxu0 %v859
    %908 = vmatprep.mubr.bf16.mxu0 %v740
    %909 = vmatmul.mubr.bf16.gmra.mrb[0].mxu0 %v739
    %v910 = vpop.f32.mrb[0].mxu0
    %v911 = vadd.f32 %v778, %v910
    %v912 = vpop.f32.mrb[0].mxu0
    %v913 = vpop.f32.mrb[0].mxu0
    %v914 = vpop.f32.mrb[0].mxu0
    %915 = vdwg.mxu0
    %916 = vst [vmem:[#allocation10] sm:$0xff] %v911
    // Predicated region
    $region62: #{tpu_custom_call.1} parent=1 // pred_check
      _
    $region63: #{tpu_custom_call.1} parent=1 // pred_check_branch
      %918 = sbr.rel (0) target = $region65
    $region64: #{tpu_custom_call.1} parent=1 // pred_region
      %s920 = ssub.s32 128, 128
      %921 = vsyncadd [#allocation4], %s920
      %s923 = sshll.u32 [#allocation10], 4
      %s924 = int_to_ptr.vmem [resolvable:$true] %s923
      %926 = dma.vmem_to_hbm [thread:$0]  %s924, 128, %s11, [#allocation4]
    $region65: #{tpu_custom_call.1} parent=1 // pred_fallthru
      _
    // Predicated region
    $region66: #{tpu_custom_call.1} parent=1 // pred_check
      _
    $region67: #{tpu_custom_call.1} parent=1 // pred_check_branch
      %928 = sbr.rel (0) target = $region69
    $region68: #{tpu_custom_call.1} parent=1 // pred_region
      %929 = dma.done [#allocation4], 128
    $region69: #{tpu_custom_call.1} parent=1 // pred_fallthru
      _
    %930 = vsyncpa [#allocation3], 1
    %931 = vsyncpa [#allocation6], 1
    %932 = vsyncpa [#allocation9], 1
    %933 = vsyncpa [#allocation4], 1

</llo_original>
